<compile_context>
chip_gen: v5e
topology: v5e:2x2
jax: 0.10.0
libtpu: 0.0.40
codegen_flags: <defaults>
</compile_context>

<pallas_src>
import functools

import jax
import jax.numpy as jnp
from jax import lax
from jax.experimental import pallas as pl
from jax.experimental.pallas import tpu as pltpu


# ----------------------------- kernels -------------------------------------


def _conv1x1_kernel(x_ref, w_ref, b_ref, o_ref, *, precision):
    # x_ref: (TN, c_in, THW), w_ref: (c_out, c_in), b_ref: (c_out, 1),
    # o_ref: (TN, c_out, THW).
    w = w_ref[...]
    tn = x_ref.shape[0]
    c_out, thw = o_ref.shape[1], o_ref.shape[2]
    # Hoist the (c_out,1)->(c_out,THW) lane-broadcast out of the batch loop
    # (JAX does not CSE broadcast_in_dim).
    b_b = jnp.broadcast_to(b_ref[...], (c_out, thw))

    def body(i, carry):
        out = jnp.dot(
            w, x_ref[i],
            preferred_element_type=jnp.float32,
            precision=precision,
        )  # (c_out, THW), lane-dense
        o_ref[i] = (out + b_b).astype(o_ref.dtype)
        return carry

    # fori_loop (not a static Python unroll) bounds live ranges so large TN
    # slabs can't spill vregs; the kernel is HBM-bound so lost cross-iteration
    # overlap is free.  Small unroll keeps LLO scheduler visibility.
    lax.fori_loop(0, tn, body, 0, unroll=min(tn, 4))


def _pad_kernel(x_ref, o_ref):
    # x_ref: (TN, c_in, THW), o_ref: (TN, c_out, THW) with c_out > c_in.
    # Two direct slice stores: no concatenate temp, no sublane relayout.
    tn, c_in, thw = x_ref.shape
    c_out = o_ref.shape[1]
    o_ref[:, :c_in, :] = x_ref[...].astype(o_ref.dtype)
    o_ref[:, c_in:, :] = jnp.zeros((tn, c_out - c_in, thw), o_ref.dtype)


# ----------------------------- chip / tiling helpers ------------------------


def _round_up(x, m):
    return ((x + m - 1) // m) * m


def _tpu_params():
    """Return (vmem_capacity_bytes, num_tensorcores_per_chip)."""
    kind = ""
    try:
        kind = jax.devices()[0].device_kind.lower()
    except Exception:
        pass
    is_v7 = "v7" in kind
    vmem = None
    try:
        info = pltpu.get_tpu_info()
        vmem = getattr(info, "vmem_capacity_bytes", None)
    except Exception:
        vmem = None
    if vmem is None:
        vmem = (64 << 20) if is_v7 else (128 << 20)
    num_tc = 2 if is_v7 else 1
    return vmem, num_tc


_THW_MAX = 4096  # lane cap per tile (keeps blocks modest for huge HW)


def _choose_tiles(N, c_in, c_out, HW, budget_bytes, num_tc, itemsize=4):
    """Pick (tn, grid_n, thw, n_hw) for lane-dense, VMEM-safe blocks.

    No wrapper padding: either thw == HW (full-dim block, always legal) or
    thw is a 128-multiple and the last HW tile is partial (Pallas masks it).
    """
    if HW <= _THW_MAX:
        thw, n_hw = HW, 1
    else:
        thw = _round_up(pl.cdiv(HW, pl.cdiv(HW, _THW_MAX)), 128)
        n_hw = pl.cdiv(HW, thw)

    # Fuse batch elements up to the per-step block budget; tn need not divide
    # N (OOB batch rows only feed discarded output rows).
    per_batch = (c_in + c_out) * thw * itemsize
    tn_max = max(1, budget_bytes // max(per_batch, 1))
    tn = min(N, tn_max)
    grid_n = pl.cdiv(N, tn)

    # Megacore: only a 2-TensorCore chip (v7x) benefits from >= 2 grid steps.
    if num_tc >= 2 and grid_n * n_hw < 2:
        if N >= 2:
            tn = pl.cdiv(N, 2)
            grid_n = pl.cdiv(N, tn)
        elif HW >= 256:
            thw = _round_up(pl.cdiv(HW, 2), 128)
            n_hw = pl.cdiv(HW, thw)
    return tn, grid_n, thw, n_hw


# ----------------------------- forward -------------------------------------


def align_forward(x, c_in, c_out, weight=None, bias=None):
    """Pallas equivalent of Align.forward.  x: (N, c_in, H, W) float32."""
    N, C, H, W = x.shape
    assert C == c_in
    if c_in == c_out:
        return x  # identity

    HW = H * W
    x3 = x.reshape(N, c_in, HW)

    vmem_bytes, num_tc = _tpu_params()
    small_vmem = vmem_bytes <= (64 << 20)          # v7x
    budget = (12 << 20) if small_vmem else (24 << 20)
    tn, grid_n, thw, n_hw = _choose_tiles(N, c_in, c_out, HW, budget, num_tc)
    grid = (grid_n, n_hw)

    # vmem_limit from actual block bytes (double-buffered in+out) + headroom,
    # capped per chip (v7x has only 64 MiB physical VMEM per TensorCore).
    block_bytes = tn * (c_in + c_out) * thw * 4
    extra = 2 * (c_out * c_in + c_out) * 4
    vmem_limit = 2 * block_bytes + extra + (2 << 20)
    cap = (30 << 20) if small_vmem else (96 << 20)
    vmem_limit = int(min(max(vmem_limit, 16 << 20), cap))

    cparams = pltpu.CompilerParams(
        dimension_semantics=("parallel", "parallel"),
        vmem_limit_bytes=vmem_limit,
    )

    if c_in > c_out:
        assert weight is not None and bias is not None, (
            "Align with c_in > c_out needs conv1x1 weight and bias")
        w2 = weight.reshape(c_out, c_in).astype(x.dtype)   # (c_out,c_in,1,1) -> 2D
        b2 = bias.reshape(c_out, 1).astype(x.dtype)
        # HIGHEST = f32 parity with the PyTorch conv; cheap for narrow layers
        # (hides under DMA).  Wide layers would bottleneck the MXU on f32
        # emulation (esp. v5e), so fall back to DEFAULT there.
        precision = (jax.lax.Precision.HIGHEST
                     if max(c_in, c_out) < 64 else jax.lax.Precision.DEFAULT)
        cost = pl.CostEstimate(
            flops=2 * N * c_out * c_in * HW,
            transcendentals=0,
            bytes_accessed=4 * N * (c_in + c_out) * HW + 4 * c_out * (c_in + 1),
        )
        out = pl.pallas_call(
            functools.partial(_conv1x1_kernel, precision=precision),
            out_shape=jax.ShapeDtypeStruct((N, c_out, HW), x.dtype),
            grid_spec=pltpu.PrefetchScalarGridSpec(
                num_scalar_prefetch=0,
                grid=grid,
                in_specs=[
                    pl.BlockSpec((tn, c_in, thw), lambda n, h: (n, 0, h)),
                    pl.BlockSpec((c_out, c_in), lambda n, h: (0, 0)),
                    pl.BlockSpec((c_out, 1), lambda n, h: (0, 0)),
                ],
                out_specs=pl.BlockSpec((tn, c_out, thw), lambda n, h: (n, 0, h)),
            ),
            compiler_params=cparams,
            cost_estimate=cost,
        )(x3, w2, b2)
        return out.reshape(N, c_out, H, W)

    # c_in < c_out: zero-pad trailing channels (pure DMA-bound copy + zeros).
    cost = pl.CostEstimate(
        flops=0,
        transcendentals=0,
        bytes_accessed=4 * N * (c_in + c_out) * HW,
    )
    out = pl.pallas_call(
        _pad_kernel,
        out_shape=jax.ShapeDtypeStruct((N, c_out, HW), x.dtype),
        grid_spec=pltpu.PrefetchScalarGridSpec(
            num_scalar_prefetch=0,
            grid=grid,
            in_specs=[pl.BlockSpec((tn, c_in, thw), lambda n, h: (n, 0, h))],
            out_specs=pl.BlockSpec((tn, c_out, thw), lambda n, h: (n, 0, h)),
        ),
        compiler_params=cparams,
        cost_estimate=cost,
    )(x3)
    return out.reshape(N, c_out, H, W)


# ----------------------------- init / test ---------------------------------


def _init_conv1x1_params(key, c_in, c_out, dtype=jnp.float32):
    """Deterministic init matching nn.Conv2d(c_in, c_out, 1) shapes
    (kaiming-uniform-style bounds)."""
    kw, kb = jax.random.split(key)
    fan_in = c_in * 1 * 1
    bound_w = (6.0 / fan_in) ** 0.5        # kaiming_uniform(a=sqrt(5)) bound
    bound_b = 1.0 / (fan_in ** 0.5)
    weight = jax.random.uniform(kw, (c_out, c_in, 1, 1), dtype, -bound_w, bound_w)
    bias = jax.random.uniform(kb, (c_out,), dtype, -bound_b, bound_b)
    return weight, bias


if __name__ == "__main__":
    key = jax.random.PRNGKey(0)
    k_x1, k_x2, k_x3, k_p = jax.random.split(key, 4)

    N, H, W = 2, 16, 16

    # --- Case 1: c_in > c_out -> 1x1 conv (matmul kernel) ---
    c_in, c_out = 8, 4
    x = jax.random.normal(k_x1, (N, c_in, H, W), jnp.float32)
    weight, bias = _init_conv1x1_params(k_p, c_in, c_out)
    y = align_forward(x, c_in, c_out, weight, bias)
    y = jax.block_until_ready(y)
    y_ref = jnp.einsum('oc,nchw->nohw', weight.reshape(c_out, c_in), x,
                       precision=jax.lax.Precision.HIGHEST) \
        + bias.reshape(1, c_out, 1, 1)
    assert y.shape == (N, c_out, H, W)
    assert jnp.allclose(y, y_ref, atol=1e-5, rtol=1e-5)

    # --- Case 1b: non-128-multiple spatial extent + odd batch (partial tiles) ---
    Hb, Wb = 12, 19                         # HW = 228, not a 128-multiple
    xb = jax.random.normal(k_x3, (3, c_in, Hb, Wb), jnp.float32)
    yb = align_forward(xb, c_in, c_out, weight, bias)
    yb = jax.block_until_ready(yb)
    yb_ref = jnp.einsum('oc,nchw->nohw', weight.reshape(c_out, c_in), xb,
                        precision=jax.lax.Precision.HIGHEST) \
        + bias.reshape(1, c_out, 1, 1)
    assert yb.shape == (3, c_out, Hb, Wb)
    assert jnp.allclose(yb, yb_ref, atol=1e-5, rtol=1e-5)

    # --- Case 2: c_in < c_out -> zero-pad channels (pad kernel) ---
    c_in2, c_out2 = 4, 8
    x2 = jax.random.normal(k_x2, (N, c_in2, H, W), jnp.float32)
    y2 = align_forward(x2, c_in2, c_out2)
    y2 = jax.block_until_ready(y2)
    y2_ref = jnp.pad(x2, ((0, 0), (0, c_out2 - c_in2), (0, 0), (0, 0)))
    assert y2.shape == (N, c_out2, H, W)
    assert jnp.allclose(y2, y2_ref)

    # --- Case 3: c_in == c_out -> identity ---
    y3 = align_forward(x, c_in, c_in)
    y3 = jax.block_until_ready(y3)
    assert jnp.array_equal(y3, x)

    print("KERNEL_OK")
</pallas_src>

<mosaic_0001>
module attributes {stable_mosaic.version = 11 : i64} {
  func.func @_conv1x1_kernel(%arg0: i32, %arg1: i32, %arg2: memref<2x8x256xf32, #tpu.memory_space<vmem>>, %arg3: memref<4x8xf32, #tpu.memory_space<vmem>>, %arg4: memref<4x1xf32, #tpu.memory_space<vmem>>, %arg5: memref<2x4x256xf32, #tpu.memory_space<vmem>>) attributes {dimension_semantics = [#tpu.dimension_semantics<parallel>, #tpu.dimension_semantics<parallel>], iteration_bounds = array<i64: 1, 1>, scalar_prefetch = 0 : i64, scratch_operands = 0 : i64, tpu.core_type = #tpu.core_type<tc>, window_params = [{transform_indices = @transform_0, window_bounds = array<i64: 2, 8, 256>}, {pipeline_mode = #tpu.pipeline_mode<synchronous>, transform_indices = @transform_1, window_bounds = array<i64: 4, 8>}, {pipeline_mode = #tpu.pipeline_mode<synchronous>, transform_indices = @transform_2, window_bounds = array<i64: 4, 1>}, {transform_indices = @transform_3, window_bounds = array<i64: 2, 4, 256>}]} {
    %c0 = arith.constant 0 : index
    %c0_0 = arith.constant 0 : index
    %0 = vector.load %arg3[%c0, %c0_0] : memref<4x8xf32, #tpu.memory_space<vmem>>, vector<4x8xf32>
    %c0_1 = arith.constant 0 : index
    %c0_2 = arith.constant 0 : index
    %1 = vector.load %arg4[%c0_1, %c0_2] : memref<4x1xf32, #tpu.memory_space<vmem>>, vector<4x1xf32>
    %2 = vector.shape_cast %1 : vector<4x1xf32> to vector<4x1xf32>
    %3 = vector.broadcast %2 : vector<4x1xf32> to vector<4x256xf32>
    %c0_i32 = arith.constant 0 : i32
    %4 = arith.index_cast %c0_i32 : i32 to index
    %c0_3 = arith.constant 0 : index
    %c0_4 = arith.constant 0 : index
    %5 = vector.load %arg2[%4, %c0_3, %c0_4] : memref<2x8x256xf32, #tpu.memory_space<vmem>>, vector<1x8x256xf32>
    %6 = vector.shape_cast %5 : vector<1x8x256xf32> to vector<8x256xf32>
    %cst = arith.constant dense<0.000000e+00> : vector<4x256xf32>
    %7 = tpu.matmul %0, %6, %cst {dimension_numbers = #tpu.dot_dimension_numbers<[1], [0], [0], [1], [0, 0, 1, 1], [], []>, precision = #tpu.contract_precision<fp32>} : vector<4x8xf32>, vector<8x256xf32>, vector<4x256xf32> -> vector<4x256xf32>
    %8 = arith.addf %7, %3 : vector<4x256xf32>
    %9 = arith.index_cast %c0_i32 : i32 to index
    %c0_5 = arith.constant 0 : index
    %c0_6 = arith.constant 0 : index
    %10 = vector.load %arg5[%9, %c0_5, %c0_6] : memref<2x4x256xf32, #tpu.memory_space<vmem>>, vector<1x4x256xf32>
    %11 = vector.shape_cast %10 : vector<1x4x256xf32> to vector<4x256xf32>
    %12 = vector.shape_cast %8 : vector<4x256xf32> to vector<1x4x256xf32>
    tpu.vector_store %arg5[%9, %c0_5, %c0_6], %12 {strides = array<i32>} : memref<2x4x256xf32, #tpu.memory_space<vmem>>, vector<1x4x256xf32>,
    %c1_i32 = arith.constant 1 : i32
    %13 = arith.index_cast %c1_i32 : i32 to index
    %c0_7 = arith.constant 0 : index
    %c0_8 = arith.constant 0 : index
    %14 = vector.load %arg2[%13, %c0_7, %c0_8] : memref<2x8x256xf32, #tpu.memory_space<vmem>>, vector<1x8x256xf32>
    %15 = vector.shape_cast %14 : vector<1x8x256xf32> to vector<8x256xf32>
    %cst_9 = arith.constant dense<0.000000e+00> : vector<4x256xf32>
    %16 = tpu.matmul %0, %15, %cst_9 {dimension_numbers = #tpu.dot_dimension_numbers<[1], [0], [0], [1], [0, 0, 1, 1], [], []>, precision = #tpu.contract_precision<fp32>} : vector<4x8xf32>, vector<8x256xf32>, vector<4x256xf32> -> vector<4x256xf32>
    %17 = arith.addf %16, %3 : vector<4x256xf32>
    %18 = arith.index_cast %c1_i32 : i32 to index
    %c0_10 = arith.constant 0 : index
    %c0_11 = arith.constant 0 : index
    %19 = vector.load %arg5[%18, %c0_10, %c0_11] : memref<2x4x256xf32, #tpu.memory_space<vmem>>, vector<1x4x256xf32>
    %20 = vector.shape_cast %19 : vector<1x4x256xf32> to vector<4x256xf32>
    %21 = vector.shape_cast %17 : vector<4x256xf32> to vector<1x4x256xf32>
    tpu.vector_store %arg5[%18, %c0_10, %c0_11], %21 {strides = array<i32>} : memref<2x4x256xf32, #tpu.memory_space<vmem>>, vector<1x4x256xf32>,
    %c2_i32 = arith.constant 2 : i32
    return
  }
  func.func @transform_0(%arg0: i32, %arg1: i32) -> (i32, i32, i32) {
    %c0_i32 = arith.constant 0 : i32
    %c0_i32_0 = arith.constant 0 : i32
    return %arg0, %c0_i32, %arg1 : i32, i32, i32
  }
  func.func @transform_1(%arg0: i32, %arg1: i32) -> (i32, i32) {
    %c0_i32 = arith.constant 0 : i32
    %c0_i32_0 = arith.constant 0 : i32
    %c0_i32_1 = arith.constant 0 : i32
    return %c0_i32, %c0_i32_0 : i32, i32
  }
  func.func @transform_2(%arg0: i32, %arg1: i32) -> (i32, i32) {
    %c0_i32 = arith.constant 0 : i32
    %c0_i32_0 = arith.constant 0 : i32
    %c0_i32_1 = arith.constant 0 : i32
    return %c0_i32, %c0_i32_0 : i32, i32
  }
  func.func @transform_3(%arg0: i32, %arg1: i32) -> (i32, i32, i32) {
    %c0_i32 = arith.constant 0 : i32
    %c0_i32_0 = arith.constant 0 : i32
    return %arg0, %c0_i32, %arg1 : i32, i32, i32
  }
}

</mosaic_0001>

<llo_original>
// kernel: tpu_custom_call.1
$region0: #{tpu_custom_call.1}
  #allocation0 [shape = 'u32[]', space=smem, size = 0x4, offset = 0x4, fixed_abs, tag = 'smem constant byte address 0x4 - core index']
  #allocation1 [shape = 'u32[72,128]{1,0:T(1,128)}', space=vmem, size = 0x9000, scoped, tag = 'internal scratch']
  %s0 = inlined_call_operand.hbm [shape: f32[2,8,256], index: 0, kind: input, shape index: {}]
  %s1 = inlined_call_operand.vmem [shape: f32[4,8], index: 1, kind: input, shape index: {}]
  %s2 = inlined_call_operand.vmem [shape: f32[4,1], index: 2, kind: input, shape index: {}]
  %s3 = inlined_call_operand.hbm [shape: f32[2,4,256], index: 3, kind: output, shape index: {}]
  %s4 = sld [smem:[#allocation0]]
  $region26: #{tpu_custom_call.1} parent=0
    _
  %s6 = ssub.s32 1, %s4
  %s7 = scalar_select 0, %s6, %s4
  $region1: #{tpu_custom_call.1} parent=0
    #allocation2 [shape = 'u8[16384]{0}', space=vmem, size = 0x4000, scoped, tag = 'input window, operand 0, single buffered']
    #allocation3 [shape = 's32[1]{0}', space=sflag, size = 0x4, scoped, tag = 'scoped memory for tpu_custom_call.1']
    #allocation4 [shape = 's32[1]{0}', space=sflag, size = 0x4, scoped, tag = 'scoped memory for tpu_custom_call.1']
    #allocation5 [shape = 'u8[8192]{0}', space=vmem, size = 0x2000, scoped, tag = 'output window, operand 0, single buffered']
    %8 = vsyncpa [#allocation3], 0
    %9 = vsyncpa [#allocation4], 0
    // Predicated region
    $region2: #{tpu_custom_call.1} parent=1 // pred_check
      _
    $region3: #{tpu_custom_call.1} parent=1 // pred_check_branch
      %11 = sbr.rel (0) target = $region5
    $region4: #{tpu_custom_call.1} parent=1 // pred_region
      %13 = vsyncadd [#allocation3], 0
      %s14 = sshll.u32 %s0, 4
      %s15 = int_to_ptr.hbm [resolvable:$true] %s14
      %s16 = sshll.u32 [#allocation2], 4
      %s17 = int_to_ptr.vmem [resolvable:$true] %s16
      %22 = dma.hbm_to_vmem [thread:$0]  %s15, 512, %s17, [#allocation3], 256, 256, 16
    $region5: #{tpu_custom_call.1} parent=1 // pred_fallthru
      _
    // Predicated region
    $region6: #{tpu_custom_call.1} parent=1 // pred_check
      _
    $region7: #{tpu_custom_call.1} parent=1 // pred_check_branch
      %24 = sbr.rel (0) target = $region9
    $region8: #{tpu_custom_call.1} parent=1 // pred_region
      _
    $region9: #{tpu_custom_call.1} parent=1 // pred_fallthru
      _
    // Predicated region
    $region10: #{tpu_custom_call.1} parent=1 // pred_check
      _
    $region11: #{tpu_custom_call.1} parent=1 // pred_check_branch
      %26 = sbr.rel (0) target = $region13
    $region12: #{tpu_custom_call.1} parent=1 // pred_region
      _
    $region13: #{tpu_custom_call.1} parent=1 // pred_fallthru
      _
    // Predicated region
    $region14: #{tpu_custom_call.1} parent=1 // pred_check
      _
    $region15: #{tpu_custom_call.1} parent=1 // pred_check_branch
      %28 = sbr.rel (0) target = $region17
    $region16: #{tpu_custom_call.1} parent=1 // pred_region
      %30 = dma.done [#allocation3], 512
    $region17: #{tpu_custom_call.1} parent=1 // pred_fallthru
      _
    %v31 = vld [vmem:[%s1] sm:$0xf]
    %v32 = vld [vmem:[%s2] sm:$0xf]
    %34 = vset.pattern.permute.xlu0 0
    %35 = vperm.xlu0 %34, %v32
    %v36 = vpop.permute.xlu0 %35
    %v38 = vld [vmem:[#allocation2] sm:$0xff]
    %v39 = vld [vmem:[#allocation2 + $0x8] sm:$0xff]
    %vm40 = vcmask 64512
    %v42 = vsel %vm40, %v31, 0
    %44 = vmatpush.msra.mxu0 0.0
    %45 = vmatpush.msra.mxu0 0.0
    %46 = vmatpush.msra.mxu0 0.0
    %47 = vmatpush.msra.mxu0 0.0
    %48 = vmatpush.msra.mxu0 0.0
    %49 = vmatpush.msra.mxu0 0.0
    %50 = vmatpush.msra.mxu0 0.0
    %51 = vmatpush.msra.mxu0 0.0
    %52 = vmatpush.msra.mxu0 0.0
    %53 = vmatpush.msra.mxu0 0.0
    %54 = vmatpush.msra.mxu0 0.0
    %55 = vmatpush.msra.mxu0 0.0
    %56 = vmatpush.msra.mxu0 0.0
    %57 = vmatpush.msra.mxu0 0.0
    %58 = vmatpush.msra.mxu0 0.0
    %v59 = vand.u32 %v38, 4294901760
    %60 = vmatpush.msra.mxu0 %v59
    %v61 = vand.u32 %v42, 4294901760
    %v62 = vsub.f32 %v42, %v61
    %v63 = vand.u32 %v62, 4294901760
    %v64 = vsub.f32 %v62, %v63
    %v65 = vand.u32 %v64, 4294901760
    %66 = vmatmul.f32.gmra.mxu0 %v65
    %v67 = vpop.f32.mrf.mxu0
    %v68 = vadd.f32 %v36, %v67
    %69 = vdwg.mxu0
    %70 = vmatpush.msra.mxu0 0.0
    %71 = vmatpush.msra.mxu0 0.0
    %72 = vmatpush.msra.mxu0 0.0
    %73 = vmatpush.msra.mxu0 0.0
    %74 = vmatpush.msra.mxu0 0.0
    %75 = vmatpush.msra.mxu0 0.0
    %76 = vmatpush.msra.mxu0 0.0
    %77 = vmatpush.msra.mxu0 0.0
    %78 = vmatpush.msra.mxu0 0.0
    %79 = vmatpush.msra.mxu0 0.0
    %80 = vmatpush.msra.mxu0 0.0
    %81 = vmatpush.msra.mxu0 0.0
    %82 = vmatpush.msra.mxu0 0.0
    %83 = vmatpush.msra.mxu0 0.0
    %84 = vmatpush.msra.mxu0 0.0
    %v85 = vand.u32 %v38, 4294901760
    %v86 = vsub.f32 %v38, %v85
    %v87 = vand.u32 %v86, 4294901760
    %v88 = vsub.f32 %v86, %v87
    %v89 = vand.u32 %v88, 4294901760
    %90 = vmatpush.msra.mxu0 %v89
    %v91 = vand.u32 %v42, 4294901760
    %92 = vmatmul.f32.gmra.mxu0 %v91
    %v93 = vpop.f32.mrf.mxu0
    %v94 = vadd.f32 %v68, %v93
    %95 = vdwg.mxu0
    %96 = vmatpush.msra.mxu0 0.0
    %97 = vmatpush.msra.mxu0 0.0
    %98 = vmatpush.msra.mxu0 0.0
    %99 = vmatpush.msra.mxu0 0.0
    %100 = vmatpush.msra.mxu0 0.0
    %101 = vmatpush.msra.mxu0 0.0
    %102 = vmatpush.msra.mxu0 0.0
    %103 = vmatpush.msra.mxu0 0.0
    %104 = vmatpush.msra.mxu0 0.0
    %105 = vmatpush.msra.mxu0 0.0
    %106 = vmatpush.msra.mxu0 0.0
    %107 = vmatpush.msra.mxu0 0.0
    %108 = vmatpush.msra.mxu0 0.0
    %109 = vmatpush.msra.mxu0 0.0
    %110 = vmatpush.msra.mxu0 0.0
    %v111 = vand.u32 %v38, 4294901760
    %v112 = vsub.f32 %v38, %v111
    %113 = vmatpush.msra.mxu0 %v112
    %v114 = vand.u32 %v42, 4294901760
    %v115 = vsub.f32 %v42, %v114
    %116 = vmatmul.f32.gmra.mxu0 %v115
    %v117 = vpop.f32.mrf.mxu0
    %v118 = vadd.f32 %v94, %v117
    %119 = vdwg.mxu0
    %120 = vmatpush.msra.mxu0 0.0
    %121 = vmatpush.msra.mxu0 0.0
    %122 = vmatpush.msra.mxu0 0.0
    %123 = vmatpush.msra.mxu0 0.0
    %124 = vmatpush.msra.mxu0 0.0
    %125 = vmatpush.msra.mxu0 0.0
    %126 = vmatpush.msra.mxu0 0.0
    %127 = vmatpush.msra.mxu0 0.0
    %128 = vmatpush.msra.mxu0 0.0
    %129 = vmatpush.msra.mxu0 0.0
    %130 = vmatpush.msra.mxu0 0.0
    %131 = vmatpush.msra.mxu0 0.0
    %132 = vmatpush.msra.mxu0 0.0
    %133 = vmatpush.msra.mxu0 0.0
    %134 = vmatpush.msra.mxu0 0.0
    %v135 = vand.u32 %v38, 4294901760
    %136 = vmatpush.msra.mxu0 %v135
    %v137 = vand.u32 %v42, 4294901760
    %v138 = vsub.f32 %v42, %v137
    %v139 = vand.u32 %v138, 4294901760
    %140 = vmatmul.f32.gmra.mxu0 %v139
    %v141 = vpop.f32.mrf.mxu0
    %v142 = vadd.f32 %v118, %v141
    %143 = vdwg.mxu0
    %144 = vmatpush.msra.mxu0 0.0
    %145 = vmatpush.msra.mxu0 0.0
    %146 = vmatpush.msra.mxu0 0.0
    %147 = vmatpush.msra.mxu0 0.0
    %148 = vmatpush.msra.mxu0 0.0
    %149 = vmatpush.msra.mxu0 0.0
    %150 = vmatpush.msra.mxu0 0.0
    %151 = vmatpush.msra.mxu0 0.0
    %152 = vmatpush.msra.mxu0 0.0
    %153 = vmatpush.msra.mxu0 0.0
    %154 = vmatpush.msra.mxu0 0.0
    %155 = vmatpush.msra.mxu0 0.0
    %156 = vmatpush.msra.mxu0 0.0
    %157 = vmatpush.msra.mxu0 0.0
    %158 = vmatpush.msra.mxu0 0.0
    %v159 = vand.u32 %v38, 4294901760
    %v160 = vsub.f32 %v38, %v159
    %v161 = vand.u32 %v160, 4294901760
    %162 = vmatpush.msra.mxu0 %v161
    %v163 = vand.u32 %v42, 4294901760
    %164 = vmatmul.f32.gmra.mxu0 %v163
    %v165 = vpop.f32.mrf.mxu0
    %v166 = vadd.f32 %v142, %v165
    %167 = vdwg.mxu0
    %168 = vmatpush.msra.mxu0 0.0
    %169 = vmatpush.msra.mxu0 0.0
    %170 = vmatpush.msra.mxu0 0.0
    %171 = vmatpush.msra.mxu0 0.0
    %172 = vmatpush.msra.mxu0 0.0
    %173 = vmatpush.msra.mxu0 0.0
    %174 = vmatpush.msra.mxu0 0.0
    %175 = vmatpush.msra.mxu0 0.0
    %176 = vmatpush.msra.mxu0 0.0
    %177 = vmatpush.msra.mxu0 0.0
    %178 = vmatpush.msra.mxu0 0.0
    %179 = vmatpush.msra.mxu0 0.0
    %180 = vmatpush.msra.mxu0 0.0
    %181 = vmatpush.msra.mxu0 0.0
    %182 = vmatpush.msra.mxu0 0.0
    %v183 = vand.u32 %v38, 4294901760
    %184 = vmatpush.msra.mxu0 %v183
    %v185 = vand.u32 %v42, 4294901760
    %186 = vmatmul.f32.gmra.mxu0 %v185
    %v187 = vpop.f32.mrf.mxu0
    %v188 = vadd.f32 %v166, %v187
    %189 = vdwg.mxu0
    %190 = vmatpush.msra.mxu0 0.0
    %191 = vmatpush.msra.mxu0 0.0
    %192 = vmatpush.msra.mxu0 0.0
    %193 = vmatpush.msra.mxu0 0.0
    %194 = vmatpush.msra.mxu0 0.0
    %195 = vmatpush.msra.mxu0 0.0
    %196 = vmatpush.msra.mxu0 0.0
    %197 = vmatpush.msra.mxu0 0.0
    %198 = vmatpush.msra.mxu0 0.0
    %199 = vmatpush.msra.mxu0 0.0
    %200 = vmatpush.msra.mxu0 0.0
    %201 = vmatpush.msra.mxu0 0.0
    %202 = vmatpush.msra.mxu0 0.0
    %203 = vmatpush.msra.mxu0 0.0
    %204 = vmatpush.msra.mxu0 0.0
    %v205 = vand.u32 %v39, 4294901760
    %206 = vmatpush.msra.mxu0 %v205
    %v207 = vand.u32 %v42, 4294901760
    %v208 = vsub.f32 %v42, %v207
    %v209 = vand.u32 %v208, 4294901760
    %v210 = vsub.f32 %v208, %v209
    %v211 = vand.u32 %v210, 4294901760
    %212 = vmatmul.f32.gmra.mxu0 %v211
    %v213 = vpop.f32.mrf.mxu0
    %v214 = vadd.f32 %v36, %v213
    %215 = vdwg.mxu0
    %216 = vmatpush.msra.mxu0 0.0
    %217 = vmatpush.msra.mxu0 0.0
    %218 = vmatpush.msra.mxu0 0.0
    %219 = vmatpush.msra.mxu0 0.0
    %220 = vmatpush.msra.mxu0 0.0
    %221 = vmatpush.msra.mxu0 0.0
    %222 = vmatpush.msra.mxu0 0.0
    %223 = vmatpush.msra.mxu0 0.0
    %224 = vmatpush.msra.mxu0 0.0
    %225 = vmatpush.msra.mxu0 0.0
    %226 = vmatpush.msra.mxu0 0.0
    %227 = vmatpush.msra.mxu0 0.0
    %228 = vmatpush.msra.mxu0 0.0
    %229 = vmatpush.msra.mxu0 0.0
    %230 = vmatpush.msra.mxu0 0.0
    %v231 = vand.u32 %v39, 4294901760
    %v232 = vsub.f32 %v39, %v231
    %v233 = vand.u32 %v232, 4294901760
    %v234 = vsub.f32 %v232, %v233
    %v235 = vand.u32 %v234, 4294901760
    %236 = vmatpush.msra.mxu0 %v235
    %v237 = vand.u32 %v42, 4294901760
    %238 = vmatmul.f32.gmra.mxu0 %v237
    %v239 = vpop.f32.mrf.mxu0
    %v240 = vadd.f32 %v214, %v239
    %241 = vdwg.mxu0
    %242 = vmatpush.msra.mxu0 0.0
    %243 = vmatpush.msra.mxu0 0.0
    %244 = vmatpush.msra.mxu0 0.0
    %245 = vmatpush.msra.mxu0 0.0
    %246 = vmatpush.msra.mxu0 0.0
    %247 = vmatpush.msra.mxu0 0.0
    %248 = vmatpush.msra.mxu0 0.0
    %249 = vmatpush.msra.mxu0 0.0
    %250 = vmatpush.msra.mxu0 0.0
    %251 = vmatpush.msra.mxu0 0.0
    %252 = vmatpush.msra.mxu0 0.0
    %253 = vmatpush.msra.mxu0 0.0
    %254 = vmatpush.msra.mxu0 0.0
    %255 = vmatpush.msra.mxu0 0.0
    %256 = vmatpush.msra.mxu0 0.0
    %v257 = vand.u32 %v39, 4294901760
    %v258 = vsub.f32 %v39, %v257
    %259 = vmatpush.msra.mxu0 %v258
    %v260 = vand.u32 %v42, 4294901760
    %v261 = vsub.f32 %v42, %v260
    %262 = vmatmul.f32.gmra.mxu0 %v261
    %v263 = vpop.f32.mrf.mxu0
    %v264 = vadd.f32 %v240, %v263
    %265 = vdwg.mxu0
    %266 = vmatpush.msra.mxu0 0.0
    %267 = vmatpush.msra.mxu0 0.0
    %268 = vmatpush.msra.mxu0 0.0
    %269 = vmatpush.msra.mxu0 0.0
    %270 = vmatpush.msra.mxu0 0.0
    %271 = vmatpush.msra.mxu0 0.0
    %272 = vmatpush.msra.mxu0 0.0
    %273 = vmatpush.msra.mxu0 0.0
    %274 = vmatpush.msra.mxu0 0.0
    %275 = vmatpush.msra.mxu0 0.0
    %276 = vmatpush.msra.mxu0 0.0
    %277 = vmatpush.msra.mxu0 0.0
    %278 = vmatpush.msra.mxu0 0.0
    %279 = vmatpush.msra.mxu0 0.0
    %280 = vmatpush.msra.mxu0 0.0
    %v281 = vand.u32 %v39, 4294901760
    %282 = vmatpush.msra.mxu0 %v281
    %v283 = vand.u32 %v42, 4294901760
    %v284 = vsub.f32 %v42, %v283
    %v285 = vand.u32 %v284, 4294901760
    %286 = vmatmul.f32.gmra.mxu0 %v285
    %v287 = vpop.f32.mrf.mxu0
    %v288 = vadd.f32 %v264, %v287
    %289 = vdwg.mxu0
    %290 = vmatpush.msra.mxu0 0.0
    %291 = vmatpush.msra.mxu0 0.0
    %292 = vmatpush.msra.mxu0 0.0
    %293 = vmatpush.msra.mxu0 0.0
    %294 = vmatpush.msra.mxu0 0.0
    %295 = vmatpush.msra.mxu0 0.0
    %296 = vmatpush.msra.mxu0 0.0
    %297 = vmatpush.msra.mxu0 0.0
    %298 = vmatpush.msra.mxu0 0.0
    %299 = vmatpush.msra.mxu0 0.0
    %300 = vmatpush.msra.mxu0 0.0
    %301 = vmatpush.msra.mxu0 0.0
    %302 = vmatpush.msra.mxu0 0.0
    %303 = vmatpush.msra.mxu0 0.0
    %304 = vmatpush.msra.mxu0 0.0
    %v305 = vand.u32 %v39, 4294901760
    %v306 = vsub.f32 %v39, %v305
    %v307 = vand.u32 %v306, 4294901760
    %308 = vmatpush.msra.mxu0 %v307
    %v309 = vand.u32 %v42, 4294901760
    %310 = vmatmul.f32.gmra.mxu0 %v309
    %v311 = vpop.f32.mrf.mxu0
    %v312 = vadd.f32 %v288, %v311
    %313 = vdwg.mxu0
    %314 = vmatpush.msra.mxu0 0.0
    %315 = vmatpush.msra.mxu0 0.0
    %316 = vmatpush.msra.mxu0 0.0
    %317 = vmatpush.msra.mxu0 0.0
    %318 = vmatpush.msra.mxu0 0.0
    %319 = vmatpush.msra.mxu0 0.0
    %320 = vmatpush.msra.mxu0 0.0
    %321 = vmatpush.msra.mxu0 0.0
    %322 = vmatpush.msra.mxu0 0.0
    %323 = vmatpush.msra.mxu0 0.0
    %324 = vmatpush.msra.mxu0 0.0
    %325 = vmatpush.msra.mxu0 0.0
    %326 = vmatpush.msra.mxu0 0.0
    %327 = vmatpush.msra.mxu0 0.0
    %328 = vmatpush.msra.mxu0 0.0
    %v329 = vand.u32 %v39, 4294901760
    %330 = vmatpush.msra.mxu0 %v329
    %v331 = vand.u32 %v42, 4294901760
    %332 = vmatmul.f32.gmra.mxu0 %v331
    %v333 = vpop.f32.mrf.mxu0
    %v334 = vadd.f32 %v312, %v333
    %335 = vdwg.mxu0
    %v338 = vrot.slane %v334, 4
    %vm339 = vcmask 1043456
    %v340 = vsel %vm339, %v188, %v338
    %342 = vst [vmem:[#allocation5] sm:$0xff] %v340
    %s343 = scalar_lea.vmem [#allocation2], 16
    %v344 = vld [vmem:[%s343] sm:$0xff]
    %v345 = vld [vmem:[%s343 + $0x8] sm:$0xff]
    %346 = vmatpush.msra.mxu0 0.0
    %347 = vmatpush.msra.mxu0 0.0
    %348 = vmatpush.msra.mxu0 0.0
    %349 = vmatpush.msra.mxu0 0.0
    %350 = vmatpush.msra.mxu0 0.0
    %351 = vmatpush.msra.mxu0 0.0
    %352 = vmatpush.msra.mxu0 0.0
    %353 = vmatpush.msra.mxu0 0.0
    %354 = vmatpush.msra.mxu0 0.0
    %355 = vmatpush.msra.mxu0 0.0
    %356 = vmatpush.msra.mxu0 0.0
    %357 = vmatpush.msra.mxu0 0.0
    %358 = vmatpush.msra.mxu0 0.0
    %359 = vmatpush.msra.mxu0 0.0
    %360 = vmatpush.msra.mxu0 0.0
    %v361 = vand.u32 %v344, 4294901760
    %362 = vmatpush.msra.mxu0 %v361
    %v363 = vand.u32 %v42, 4294901760
    %v364 = vsub.f32 %v42, %v363
    %v365 = vand.u32 %v364, 4294901760
    %v366 = vsub.f32 %v364, %v365
    %v367 = vand.u32 %v366, 4294901760
    %368 = vmatmul.f32.gmra.mxu0 %v367
    %v369 = vpop.f32.mrf.mxu0
    %v370 = vadd.f32 %v36, %v369
    %371 = vdwg.mxu0
    %372 = vmatpush.msra.mxu0 0.0
    %373 = vmatpush.msra.mxu0 0.0
    %374 = vmatpush.msra.mxu0 0.0
    %375 = vmatpush.msra.mxu0 0.0
    %376 = vmatpush.msra.mxu0 0.0
    %377 = vmatpush.msra.mxu0 0.0
    %378 = vmatpush.msra.mxu0 0.0
    %379 = vmatpush.msra.mxu0 0.0
    %380 = vmatpush.msra.mxu0 0.0
    %381 = vmatpush.msra.mxu0 0.0
    %382 = vmatpush.msra.mxu0 0.0
    %383 = vmatpush.msra.mxu0 0.0
    %384 = vmatpush.msra.mxu0 0.0
    %385 = vmatpush.msra.mxu0 0.0
    %386 = vmatpush.msra.mxu0 0.0
    %v387 = vand.u32 %v344, 4294901760
    %v388 = vsub.f32 %v344, %v387
    %v389 = vand.u32 %v388, 4294901760
    %v390 = vsub.f32 %v388, %v389
    %v391 = vand.u32 %v390, 4294901760
    %392 = vmatpush.msra.mxu0 %v391
    %v393 = vand.u32 %v42, 4294901760
    %394 = vmatmul.f32.gmra.mxu0 %v393
    %v395 = vpop.f32.mrf.mxu0
    %v396 = vadd.f32 %v370, %v395
    %397 = vdwg.mxu0
    %398 = vmatpush.msra.mxu0 0.0
    %399 = vmatpush.msra.mxu0 0.0
    %400 = vmatpush.msra.mxu0 0.0
    %401 = vmatpush.msra.mxu0 0.0
    %402 = vmatpush.msra.mxu0 0.0
    %403 = vmatpush.msra.mxu0 0.0
    %404 = vmatpush.msra.mxu0 0.0
    %405 = vmatpush.msra.mxu0 0.0
    %406 = vmatpush.msra.mxu0 0.0
    %407 = vmatpush.msra.mxu0 0.0
    %408 = vmatpush.msra.mxu0 0.0
    %409 = vmatpush.msra.mxu0 0.0
    %410 = vmatpush.msra.mxu0 0.0
    %411 = vmatpush.msra.mxu0 0.0
    %412 = vmatpush.msra.mxu0 0.0
    %v413 = vand.u32 %v344, 4294901760
    %v414 = vsub.f32 %v344, %v413
    %415 = vmatpush.msra.mxu0 %v414
    %v416 = vand.u32 %v42, 4294901760
    %v417 = vsub.f32 %v42, %v416
    %418 = vmatmul.f32.gmra.mxu0 %v417
    %v419 = vpop.f32.mrf.mxu0
    %v420 = vadd.f32 %v396, %v419
    %421 = vdwg.mxu0
    %422 = vmatpush.msra.mxu0 0.0
    %423 = vmatpush.msra.mxu0 0.0
    %424 = vmatpush.msra.mxu0 0.0
    %425 = vmatpush.msra.mxu0 0.0
    %426 = vmatpush.msra.mxu0 0.0
    %427 = vmatpush.msra.mxu0 0.0
    %428 = vmatpush.msra.mxu0 0.0
    %429 = vmatpush.msra.mxu0 0.0
    %430 = vmatpush.msra.mxu0 0.0
    %431 = vmatpush.msra.mxu0 0.0
    %432 = vmatpush.msra.mxu0 0.0
    %433 = vmatpush.msra.mxu0 0.0
    %434 = vmatpush.msra.mxu0 0.0
    %435 = vmatpush.msra.mxu0 0.0
    %436 = vmatpush.msra.mxu0 0.0
    %v437 = vand.u32 %v344, 4294901760
    %438 = vmatpush.msra.mxu0 %v437
    %v439 = vand.u32 %v42, 4294901760
    %v440 = vsub.f32 %v42, %v439
    %v441 = vand.u32 %v440, 4294901760
    %442 = vmatmul.f32.gmra.mxu0 %v441
    %v443 = vpop.f32.mrf.mxu0
    %v444 = vadd.f32 %v420, %v443
    %445 = vdwg.mxu0
    %446 = vmatpush.msra.mxu0 0.0
    %447 = vmatpush.msra.mxu0 0.0
    %448 = vmatpush.msra.mxu0 0.0
    %449 = vmatpush.msra.mxu0 0.0
    %450 = vmatpush.msra.mxu0 0.0
    %451 = vmatpush.msra.mxu0 0.0
    %452 = vmatpush.msra.mxu0 0.0
    %453 = vmatpush.msra.mxu0 0.0
    %454 = vmatpush.msra.mxu0 0.0
    %455 = vmatpush.msra.mxu0 0.0
    %456 = vmatpush.msra.mxu0 0.0
    %457 = vmatpush.msra.mxu0 0.0
    %458 = vmatpush.msra.mxu0 0.0
    %459 = vmatpush.msra.mxu0 0.0
    %460 = vmatpush.msra.mxu0 0.0
    %v461 = vand.u32 %v344, 4294901760
    %v462 = vsub.f32 %v344, %v461
    %v463 = vand.u32 %v462, 4294901760
    %464 = vmatpush.msra.mxu0 %v463
    %v465 = vand.u32 %v42, 4294901760
    %466 = vmatmul.f32.gmra.mxu0 %v465
    %v467 = vpop.f32.mrf.mxu0
    %v468 = vadd.f32 %v444, %v467
    %469 = vdwg.mxu0
    %470 = vmatpush.msra.mxu0 0.0
    %471 = vmatpush.msra.mxu0 0.0
    %472 = vmatpush.msra.mxu0 0.0
    %473 = vmatpush.msra.mxu0 0.0
    %474 = vmatpush.msra.mxu0 0.0
    %475 = vmatpush.msra.mxu0 0.0
    %476 = vmatpush.msra.mxu0 0.0
    %477 = vmatpush.msra.mxu0 0.0
    %478 = vmatpush.msra.mxu0 0.0
    %479 = vmatpush.msra.mxu0 0.0
    %480 = vmatpush.msra.mxu0 0.0
    %481 = vmatpush.msra.mxu0 0.0
    %482 = vmatpush.msra.mxu0 0.0
    %483 = vmatpush.msra.mxu0 0.0
    %484 = vmatpush.msra.mxu0 0.0
    %v485 = vand.u32 %v344, 4294901760
    %486 = vmatpush.msra.mxu0 %v485
    %v487 = vand.u32 %v42, 4294901760
    %488 = vmatmul.f32.gmra.mxu0 %v487
    %v489 = vpop.f32.mrf.mxu0
    %v490 = vadd.f32 %v468, %v489
    %491 = vdwg.mxu0
    %492 = vmatpush.msra.mxu0 0.0
    %493 = vmatpush.msra.mxu0 0.0
    %494 = vmatpush.msra.mxu0 0.0
    %495 = vmatpush.msra.mxu0 0.0
    %496 = vmatpush.msra.mxu0 0.0
    %497 = vmatpush.msra.mxu0 0.0
    %498 = vmatpush.msra.mxu0 0.0
    %499 = vmatpush.msra.mxu0 0.0
    %500 = vmatpush.msra.mxu0 0.0
    %501 = vmatpush.msra.mxu0 0.0
    %502 = vmatpush.msra.mxu0 0.0
    %503 = vmatpush.msra.mxu0 0.0
    %504 = vmatpush.msra.mxu0 0.0
    %505 = vmatpush.msra.mxu0 0.0
    %506 = vmatpush.msra.mxu0 0.0
    %v507 = vand.u32 %v345, 4294901760
    %508 = vmatpush.msra.mxu0 %v507
    %v509 = vand.u32 %v42, 4294901760
    %v510 = vsub.f32 %v42, %v509
    %v511 = vand.u32 %v510, 4294901760
    %v512 = vsub.f32 %v510, %v511
    %v513 = vand.u32 %v512, 4294901760
    %514 = vmatmul.f32.gmra.mxu0 %v513
    %v515 = vpop.f32.mrf.mxu0
    %v516 = vadd.f32 %v36, %v515
    %517 = vdwg.mxu0
    %518 = vmatpush.msra.mxu0 0.0
    %519 = vmatpush.msra.mxu0 0.0
    %520 = vmatpush.msra.mxu0 0.0
    %521 = vmatpush.msra.mxu0 0.0
    %522 = vmatpush.msra.mxu0 0.0
    %523 = vmatpush.msra.mxu0 0.0
    %524 = vmatpush.msra.mxu0 0.0
    %525 = vmatpush.msra.mxu0 0.0
    %526 = vmatpush.msra.mxu0 0.0
    %527 = vmatpush.msra.mxu0 0.0
    %528 = vmatpush.msra.mxu0 0.0
    %529 = vmatpush.msra.mxu0 0.0
    %530 = vmatpush.msra.mxu0 0.0
    %531 = vmatpush.msra.mxu0 0.0
    %532 = vmatpush.msra.mxu0 0.0
    %v533 = vand.u32 %v345, 4294901760
    %v534 = vsub.f32 %v345, %v533
    %v535 = vand.u32 %v534, 4294901760
    %v536 = vsub.f32 %v534, %v535
    %v537 = vand.u32 %v536, 4294901760
    %538 = vmatpush.msra.mxu0 %v537
    %v539 = vand.u32 %v42, 4294901760
    %540 = vmatmul.f32.gmra.mxu0 %v539
    %v541 = vpop.f32.mrf.mxu0
    %v542 = vadd.f32 %v516, %v541
    %543 = vdwg.mxu0
    %544 = vmatpush.msra.mxu0 0.0
    %545 = vmatpush.msra.mxu0 0.0
    %546 = vmatpush.msra.mxu0 0.0
    %547 = vmatpush.msra.mxu0 0.0
    %548 = vmatpush.msra.mxu0 0.0
    %549 = vmatpush.msra.mxu0 0.0
    %550 = vmatpush.msra.mxu0 0.0
    %551 = vmatpush.msra.mxu0 0.0
    %552 = vmatpush.msra.mxu0 0.0
    %553 = vmatpush.msra.mxu0 0.0
    %554 = vmatpush.msra.mxu0 0.0
    %555 = vmatpush.msra.mxu0 0.0
    %556 = vmatpush.msra.mxu0 0.0
    %557 = vmatpush.msra.mxu0 0.0
    %558 = vmatpush.msra.mxu0 0.0
    %v559 = vand.u32 %v345, 4294901760
    %v560 = vsub.f32 %v345, %v559
    %561 = vmatpush.msra.mxu0 %v560
    %v562 = vand.u32 %v42, 4294901760
    %v563 = vsub.f32 %v42, %v562
    %564 = vmatmul.f32.gmra.mxu0 %v563
    %v565 = vpop.f32.mrf.mxu0
    %v566 = vadd.f32 %v542, %v565
    %567 = vdwg.mxu0
    %568 = vmatpush.msra.mxu0 0.0
    %569 = vmatpush.msra.mxu0 0.0
    %570 = vmatpush.msra.mxu0 0.0
    %571 = vmatpush.msra.mxu0 0.0
    %572 = vmatpush.msra.mxu0 0.0
    %573 = vmatpush.msra.mxu0 0.0
    %574 = vmatpush.msra.mxu0 0.0
    %575 = vmatpush.msra.mxu0 0.0
    %576 = vmatpush.msra.mxu0 0.0
    %577 = vmatpush.msra.mxu0 0.0
    %578 = vmatpush.msra.mxu0 0.0
    %579 = vmatpush.msra.mxu0 0.0
    %580 = vmatpush.msra.mxu0 0.0
    %581 = vmatpush.msra.mxu0 0.0
    %582 = vmatpush.msra.mxu0 0.0
    %v583 = vand.u32 %v345, 4294901760
    %584 = vmatpush.msra.mxu0 %v583
    %v585 = vand.u32 %v42, 4294901760
    %v586 = vsub.f32 %v42, %v585
    %v587 = vand.u32 %v586, 4294901760
    %588 = vmatmul.f32.gmra.mxu0 %v587
    %v589 = vpop.f32.mrf.mxu0
    %v590 = vadd.f32 %v566, %v589
    %591 = vdwg.mxu0
    %592 = vmatpush.msra.mxu0 0.0
    %593 = vmatpush.msra.mxu0 0.0
    %594 = vmatpush.msra.mxu0 0.0
    %595 = vmatpush.msra.mxu0 0.0
    %596 = vmatpush.msra.mxu0 0.0
    %597 = vmatpush.msra.mxu0 0.0
    %598 = vmatpush.msra.mxu0 0.0
    %599 = vmatpush.msra.mxu0 0.0
    %600 = vmatpush.msra.mxu0 0.0
    %601 = vmatpush.msra.mxu0 0.0
    %602 = vmatpush.msra.mxu0 0.0
    %603 = vmatpush.msra.mxu0 0.0
    %604 = vmatpush.msra.mxu0 0.0
    %605 = vmatpush.msra.mxu0 0.0
    %606 = vmatpush.msra.mxu0 0.0
    %v607 = vand.u32 %v345, 4294901760
    %v608 = vsub.f32 %v345, %v607
    %v609 = vand.u32 %v608, 4294901760
    %610 = vmatpush.msra.mxu0 %v609
    %v611 = vand.u32 %v42, 4294901760
    %612 = vmatmul.f32.gmra.mxu0 %v611
    %v613 = vpop.f32.mrf.mxu0
    %v614 = vadd.f32 %v590, %v613
    %615 = vdwg.mxu0
    %616 = vmatpush.msra.mxu0 0.0
    %617 = vmatpush.msra.mxu0 0.0
    %618 = vmatpush.msra.mxu0 0.0
    %619 = vmatpush.msra.mxu0 0.0
    %620 = vmatpush.msra.mxu0 0.0
    %621 = vmatpush.msra.mxu0 0.0
    %622 = vmatpush.msra.mxu0 0.0
    %623 = vmatpush.msra.mxu0 0.0
    %624 = vmatpush.msra.mxu0 0.0
    %625 = vmatpush.msra.mxu0 0.0
    %626 = vmatpush.msra.mxu0 0.0
    %627 = vmatpush.msra.mxu0 0.0
    %628 = vmatpush.msra.mxu0 0.0
    %629 = vmatpush.msra.mxu0 0.0
    %630 = vmatpush.msra.mxu0 0.0
    %v631 = vand.u32 %v345, 4294901760
    %632 = vmatpush.msra.mxu0 %v631
    %v633 = vand.u32 %v42, 4294901760
    %634 = vmatmul.f32.gmra.mxu0 %v633
    %v635 = vpop.f32.mrf.mxu0
    %v636 = vadd.f32 %v614, %v635
    %637 = vdwg.mxu0
    %v640 = vrot.slane %v636, 4
    %v641 = vsel %vm339, %v490, %v640
    %s643 = scalar_lea.vmem [#allocation5], 8
    %644 = vst [vmem:[%s643] sm:$0xff] %v641
    // Predicated region
    $region18: #{tpu_custom_call.1} parent=1 // pred_check
      _
    $region19: #{tpu_custom_call.1} parent=1 // pred_check_branch
      %646 = sbr.rel (0) target = $region21
    $region20: #{tpu_custom_call.1} parent=1 // pred_region
      %648 = vsyncadd [#allocation4], 0
      %s649 = sshll.u32 [#allocation5], 4
      %s650 = int_to_ptr.vmem [resolvable:$true] %s649
      %s651 = sshll.u32 %s3, 4
      %s652 = int_to_ptr.hbm [resolvable:$true] %s651
      %657 = dma.vmem_to_hbm [thread:$0]  %s650, 256, %s652, [#allocation4], 128, 128, 8
    $region21: #{tpu_custom_call.1} parent=1 // pred_fallthru
      _
    // Predicated region
    $region22: #{tpu_custom_call.1} parent=1 // pred_check
      _
    $region23: #{tpu_custom_call.1} parent=1 // pred_check_branch
      %659 = sbr.rel (0) target = $region25
    $region24: #{tpu_custom_call.1} parent=1 // pred_region
      %661 = dma.done [#allocation4], 256
    $region25: #{tpu_custom_call.1} parent=1 // pred_fallthru
      _
    %662 = vsyncpa [#allocation3], 1
    %663 = vsyncpa [#allocation4], 1

</llo_original>
